<compile_context>
chip_gen: v7x
topology: tpu7x:2x2x1
jax: 0.10.0
libtpu: 0.0.40
codegen_flags: <defaults>
</compile_context>

<pallas_src>
import functools

import jax
import jax.numpy as jnp
from jax import lax
from jax.experimental import pallas as pl
from jax.experimental.pallas import tpu as pltpu

K = 3  # num_filters (Chebyshev polynomial order)


def actor_kernel(x_ref, adj_ref, w1_ref, w2_ref, wf_ref, vecs_ref, ln_ref,
                 out_ref, *, accumulate_proj):
    adj = adj_ref[...]                                    # (N, N) bf16, 0/1
    n = adj.shape[0]

    # Row degree via the MXU (f32 accumulation -> exact for 0/1 entries): no
    # f32 N^2 temp and no cross-sublane reduce.  Column degrees are not needed
    # because the adjacency is symmetric (undirected graph).
    ones = jnp.ones((n, 1), jnp.bfloat16)
    deg = jnp.dot(adj, ones, preferred_element_type=jnp.float32)   # (N, 1) f32
    dinv = jnp.where(deg > 0.0, lax.rsqrt(jnp.maximum(deg, 1e-12)), 0.0)
    ndinv = -dinv             # folds the leading minus sign of L_hat
    ndinv2 = -2.0 * dinv      # folds the 2x of the Chebyshev recurrence

    # L_hat @ v  =  -dinv * (A @ (dinv * v)); L_hat itself is never built.
    # (dinv*t) and t need separate bf16 casts -- they differ by the row scale,
    # but both are tiny (N, F/H) tensors.
    def cheb(h_f32, w_ref):
        t0 = h_f32
        t1 = ndinv * jnp.dot(adj, (dinv * t0).astype(jnp.bfloat16),
                             preferred_element_type=jnp.float32)
        t2 = ndinv2 * jnp.dot(adj, (dinv * t1).astype(jnp.bfloat16),
                              preferred_element_type=jnp.float32) - t0
        if accumulate_proj:
            # v7x: MRB in-place accumulation; skips the non-128-aligned lane
            # concatenate / relayout.
            fin = w_ref.shape[0] // K
            acc = jnp.dot(t0.astype(jnp.bfloat16), w_ref[0 * fin:1 * fin, :],
                          preferred_element_type=jnp.float32)
            acc += jnp.dot(t1.astype(jnp.bfloat16), w_ref[1 * fin:2 * fin, :],
                           preferred_element_type=jnp.float32)
            acc += jnp.dot(t2.astype(jnp.bfloat16), w_ref[2 * fin:3 * fin, :],
                           preferred_element_type=jnp.float32)
            return acc
        # v5e / v6e: one fat MXU stream over the concatenated basis.
        T = jnp.concatenate([t0, t1, t2], axis=1).astype(jnp.bfloat16)
        return jnp.dot(T, w_ref[...], preferred_element_type=jnp.float32)

    # ---- conv1 + BatchNorm1d (train-mode batch stats) + SiLU -----------------
    # conv1's bias is cancelled exactly by the BN mean subtraction -> not added.
    h = cheb(x_ref[...], w1_ref)                          # (N, H) f32
    inv_n = 1.0 / h.shape[0]
    s1 = jnp.sum(h, axis=0, keepdims=True)                # single-pass stats
    s2 = jnp.sum(h * h, axis=0, keepdims=True)
    mean = s1 * inv_n
    var = jnp.maximum(s2 * inv_n - mean * mean, 0.0)      # biased variance, f32
    h = (h - mean) * lax.rsqrt(var + 1e-5)
    h = h * vecs_ref[0:1, :] + vecs_ref[1:2, :]           # BN affine
    h = h * jax.nn.sigmoid(h)                             # SiLU

    # ---- conv2 (+ bias) + tanh ------------------------------------------------
    h = jnp.tanh(cheb(h, w2_ref) + vecs_ref[2:3, :])

    # ---- final Linear(num_hiddens, 1), emitted lane-dense as (1, N) -----------
    # The scalar Linear bias is cancelled exactly by the LayerNorm mean subtract.
    y = lax.dot_general(wf_ref[...], h.astype(jnp.bfloat16),
                        dimension_numbers=(((1,), (1,)), ((), ())),
                        preferred_element_type=jnp.float32)   # (1, N)

    # ---- LayerNorm over the flattened N-vector (lane-axis, single pass) -------
    inv_nn = 1.0 / y.shape[1]
    m = jnp.sum(y, axis=1, keepdims=True) * inv_nn
    v = jnp.maximum(jnp.sum(y * y, axis=1, keepdims=True) * inv_nn - m * m, 0.0)
    y = (y - m) * lax.rsqrt(v + 1e-5)
    out_ref[...] = y * ln_ref[0:1, :] + ln_ref[1:2, :]


def _vmem_cap_bytes():
    """Physical VMEM of the attached chip; conservative (v7x) fallback."""
    try:
        info = pltpu.get_tpu_info()
        for attr in ("vmem_capacity_bytes", "vmem_size_bytes", "vmem_bytes"):
            val = getattr(info, attr, None)
            if val:
                return int(val)
    except Exception:
        pass
    return 64 * 1024 * 1024


def _vmem_limit_bytes(footprint_bytes):
    """Size the scoped VMEM limit from the real footprint, per generation."""
    cap = _vmem_cap_bytes()
    want = int(2 * footprint_bytes) + (4 << 20)   # I/O buffers + compiler headroom
    hi = int(cap * 0.85)                          # never request near-physical
    lo = min(16 << 20, hi)
    return max(min(want, hi), lo)


def _use_accumulate_projection():
    """v7x (MRB) -> three accumulate-matmuls; v5e/v6e (MRF) -> one fat matmul."""
    try:
        kind = jax.devices()[0].device_kind.lower()
    except Exception:
        return False
    return ("v7" in kind) or ("tpu7" in kind) or ("7x" in kind)


def actor_forward(x, adj, params):
    N, F = x.shape
    H = params["w1"].shape[-1]

    # Weights pre-flattened / pre-cast host-side; bf16 MXU operands with f32
    # accumulation in-kernel.
    w1f = params["w1"].reshape(K * F, H).astype(jnp.bfloat16)
    w2f = params["w2"].reshape(K * H, H).astype(jnp.bfloat16)
    wff = params["wf"].reshape(1, H).astype(jnp.bfloat16)
    # Tiny per-feature vectors packed into single VMEM tiles.  conv1 bias and
    # the final Linear bias are mathematically cancelled (BN / LN mean
    # subtraction) and are therefore not passed at all.
    vecs = jnp.concatenate(
        [params["g1"], params["be1"], params["b2"]], axis=0
    ).astype(jnp.float32)                                            # (3, H)
    ln = jnp.concatenate([params["lng"], params["lnb"]], axis=0).astype(jnp.float32)  # (2, N)

    # 0/1 adjacency stored as bf16: exact, half the HBM/VMEM bytes of f32.
    # TODO(synk): uint8 storage (4x vs f32) for v5e when N meets the (32,128)
    # int8 tiling constraint.
    adj_bf16 = adj.astype(jnp.bfloat16)
    x_f32 = x.astype(jnp.float32)

    args = (x_f32, adj_bf16, w1f, w2f, wff, vecs, ln)

    # Footprint: inputs + output + in-kernel intermediates (adj value + a
    # handful of (N, H)-sized f32 temps).
    footprint = sum(int(a.size) * a.dtype.itemsize for a in args)
    footprint += 2 * N * N                      # loaded bf16 adjacency value
    footprint += 16 * N * max(F, H) * 4         # Chebyshev / BN / SiLU temps
    footprint += N * 4                          # output

    kernel = functools.partial(actor_kernel,
                               accumulate_proj=_use_accumulate_projection())

    out = pl.pallas_call(
        kernel,
        out_shape=jax.ShapeDtypeStruct((1, N), jnp.float32),
        in_specs=[pl.BlockSpec(memory_space=pltpu.MemorySpace.VMEM)
                  for _ in args],
        out_specs=pl.BlockSpec(memory_space=pltpu.MemorySpace.VMEM),
        compiler_params=pltpu.CompilerParams(
            vmem_limit_bytes=_vmem_limit_bytes(footprint)),
    )(*args)
    return out.reshape(-1)   # matches .view(-1) in torch


def init_params(key, num_features, num_hiddens, num_nodes):
    keys = jax.random.split(key, 6)
    scale = 0.1
    return {
        "w1": scale * jax.random.normal(keys[0], (K, num_features, num_hiddens), jnp.float32),
        "b1": scale * jax.random.normal(keys[1], (1, num_hiddens), jnp.float32),   # cancelled by BN
        "g1": jnp.ones((1, num_hiddens), jnp.float32),    # BatchNorm weight
        "be1": jnp.zeros((1, num_hiddens), jnp.float32),  # BatchNorm bias
        "w2": scale * jax.random.normal(keys[2], (K, num_hiddens, num_hiddens), jnp.float32),
        "b2": scale * jax.random.normal(keys[3], (1, num_hiddens), jnp.float32),
        "wf": scale * jax.random.normal(keys[4], (num_hiddens, 1), jnp.float32),
        "bf": scale * jax.random.normal(keys[5], (1, 1), jnp.float32),             # cancelled by LN
        "lng": jnp.ones((1, num_nodes), jnp.float32),     # LayerNorm weight
        "lnb": jnp.zeros((1, num_nodes), jnp.float32),    # LayerNorm bias
    }


if __name__ == "__main__":
    num_nodes, num_features, num_hiddens = 16, 8, 32

    key = jax.random.PRNGKey(0)
    k_x, k_adj, k_p = jax.random.split(key, 3)

    x = jax.random.normal(k_x, (num_nodes, num_features), jnp.float32)

    # symmetric 0/1 adjacency without self-loops
    r = jax.random.uniform(k_adj, (num_nodes, num_nodes))
    upper = (r > 0.5).astype(jnp.float32)
    adj = jnp.triu(upper, k=1)
    adj = adj + adj.T

    params = init_params(k_p, num_features, num_hiddens, num_nodes)

    out = actor_forward(x, adj, params)
    jax.block_until_ready(out)
    assert out.shape == (num_nodes,)
    print("KERNEL_OK")
</pallas_src>

<mosaic_0001>
module attributes {stable_mosaic.version = 11 : i64} {
  func.func @actor_kernel(%arg0: memref<16x8xf32, #tpu.memory_space<vmem>>, %arg1: memref<16x16xbf16, #tpu.memory_space<vmem>>, %arg2: memref<24x32xbf16, #tpu.memory_space<vmem>>, %arg3: memref<96x32xbf16, #tpu.memory_space<vmem>>, %arg4: memref<1x32xbf16, #tpu.memory_space<vmem>>, %arg5: memref<3x32xf32, #tpu.memory_space<vmem>>, %arg6: memref<2x16xf32, #tpu.memory_space<vmem>>, %arg7: memref<1x16xf32, #tpu.memory_space<vmem>>) attributes {dimension_semantics = [], scalar_prefetch = 0 : i64, scratch_operands = 0 : i64, tpu.core_type = #tpu.core_type<tc>} {
    %c0 = arith.constant 0 : index
    %c0_0 = arith.constant 0 : index
    %0 = vector.load %arg1[%c0, %c0_0] : memref<16x16xbf16, #tpu.memory_space<vmem>>, vector<16x16xbf16>
    %cst = arith.constant 1.000000e+00 : bf16
    %1 = vector.broadcast %cst : bf16 to vector<16x1xbf16>
    %cst_1 = arith.constant dense<0.000000e+00> : vector<16x1xf32>
    %2 = tpu.matmul %0, %1, %cst_1 {dimension_numbers = #tpu.dot_dimension_numbers<[1], [0], [0], [1], [0, 0, 1, 1], [], []>} : vector<16x16xbf16>, vector<16x1xbf16>, vector<16x1xf32> -> vector<16x1xf32>
    %cst_2 = arith.constant 0.000000e+00 : f32
    %3 = vector.broadcast %cst_2 : f32 to vector<16x1xf32>
    %4 = arith.cmpf ogt, %2, %3 : vector<16x1xf32>
    %cst_3 = arith.constant 9.99999996E-13 : f32
    %5 = vector.broadcast %cst_3 : f32 to vector<16x1xf32>
    %6 = arith.maximumf %2, %5 : vector<16x1xf32>
    %7 = math.rsqrt %6 : vector<16x1xf32>
    %cst_4 = arith.constant 0.000000e+00 : f32
    %8 = vector.broadcast %cst_4 : f32 to vector<16x1xf32>
    %9 = arith.select %4, %7, %8 : vector<16x1xi1>, vector<16x1xf32>
    %cst_5 = arith.constant 0.000000e+00 : f32
    %10 = vector.broadcast %cst_5 : f32 to vector<16x1xf32>
    %11 = arith.subf %10, %9 : vector<16x1xf32>
    %cst_6 = arith.constant -2.000000e+00 : f32
    %12 = vector.broadcast %cst_6 : f32 to vector<16x1xf32>
    %13 = arith.mulf %12, %9 : vector<16x1xf32>
    %c0_7 = arith.constant 0 : index
    %c0_8 = arith.constant 0 : index
    %14 = vector.load %arg0[%c0_7, %c0_8] : memref<16x8xf32, #tpu.memory_space<vmem>>, vector<16x8xf32>
    %15 = vector.broadcast %9 : vector<16x1xf32> to vector<16x8xf32>
    %16 = arith.mulf %15, %14 : vector<16x8xf32>
    %17 = arith.truncf %16 : vector<16x8xf32> to vector<16x8xbf16>
    %cst_9 = arith.constant dense<0.000000e+00> : vector<16x8xf32>
    %18 = tpu.matmul %0, %17, %cst_9 {dimension_numbers = #tpu.dot_dimension_numbers<[1], [0], [0], [1], [0, 0, 1, 1], [], []>} : vector<16x16xbf16>, vector<16x8xbf16>, vector<16x8xf32> -> vector<16x8xf32>
    %19 = vector.broadcast %11 : vector<16x1xf32> to vector<16x8xf32>
    %20 = arith.mulf %19, %18 : vector<16x8xf32>
    %21 = vector.broadcast %9 : vector<16x1xf32> to vector<16x8xf32>
    %22 = arith.mulf %21, %20 : vector<16x8xf32>
    %23 = arith.truncf %22 : vector<16x8xf32> to vector<16x8xbf16>
    %cst_10 = arith.constant dense<0.000000e+00> : vector<16x8xf32>
    %24 = tpu.matmul %0, %23, %cst_10 {dimension_numbers = #tpu.dot_dimension_numbers<[1], [0], [0], [1], [0, 0, 1, 1], [], []>} : vector<16x16xbf16>, vector<16x8xbf16>, vector<16x8xf32> -> vector<16x8xf32>
    %25 = vector.broadcast %13 : vector<16x1xf32> to vector<16x8xf32>
    %26 = arith.mulf %25, %24 : vector<16x8xf32>
    %27 = arith.subf %26, %14 : vector<16x8xf32>
    %28 = tpu.concatenate %14, %20, %27 in 1 : vector<16x8xf32>, vector<16x8xf32>, vector<16x8xf32> -> vector<16x24xf32>
    %29 = arith.truncf %28 : vector<16x24xf32> to vector<16x24xbf16>
    %c0_11 = arith.constant 0 : index
    %c0_12 = arith.constant 0 : index
    %30 = vector.load %arg2[%c0_11, %c0_12] : memref<24x32xbf16, #tpu.memory_space<vmem>>, vector<24x32xbf16>
    %cst_13 = arith.constant dense<0.000000e+00> : vector<16x32xf32>
    %31 = tpu.matmul %29, %30, %cst_13 {dimension_numbers = #tpu.dot_dimension_numbers<[1], [0], [0], [1], [0, 0, 1, 1], [], []>} : vector<16x24xbf16>, vector<24x32xbf16>, vector<16x32xf32> -> vector<16x32xf32>
    %cst_14 = arith.constant dense<0.000000e+00> : vector<32xf32>
    %32 = vector.multi_reduction <add>, %31, %cst_14 [0] : vector<16x32xf32> to vector<32xf32>
    %33 = vector.shape_cast %32 : vector<32xf32> to vector<1x32xf32>
    %34 = arith.mulf %31, %31 : vector<16x32xf32>
    %cst_15 = arith.constant dense<0.000000e+00> : vector<32xf32>
    %35 = vector.multi_reduction <add>, %34, %cst_15 [0] : vector<16x32xf32> to vector<32xf32>
    %36 = vector.shape_cast %35 : vector<32xf32> to vector<1x32xf32>
    %cst_16 = arith.constant 6.250000e-02 : f32
    %37 = vector.broadcast %cst_16 : f32 to vector<1x32xf32>
    %38 = arith.mulf %33, %37 : vector<1x32xf32>
    %cst_17 = arith.constant 6.250000e-02 : f32
    %39 = vector.broadcast %cst_17 : f32 to vector<1x32xf32>
    %40 = arith.mulf %36, %39 : vector<1x32xf32>
    %41 = arith.mulf %38, %38 : vector<1x32xf32>
    %42 = arith.subf %40, %41 : vector<1x32xf32>
    %cst_18 = arith.constant 0.000000e+00 : f32
    %43 = vector.broadcast %cst_18 : f32 to vector<1x32xf32>
    %44 = arith.maximumf %42, %43 : vector<1x32xf32>
    %45 = vector.broadcast %38 : vector<1x32xf32> to vector<16x32xf32>
    %46 = arith.subf %31, %45 : vector<16x32xf32>
    %cst_19 = arith.constant 9.99999974E-6 : f32
    %47 = vector.broadcast %cst_19 : f32 to vector<1x32xf32>
    %48 = arith.addf %44, %47 : vector<1x32xf32>
    %49 = math.rsqrt %48 : vector<1x32xf32>
    %50 = vector.broadcast %49 : vector<1x32xf32> to vector<16x32xf32>
    %51 = arith.mulf %46, %50 : vector<16x32xf32>
    %c0_20 = arith.constant 0 : index
    %c0_21 = arith.constant 0 : index
    %52 = vector.load %arg5[%c0_20, %c0_21] : memref<3x32xf32, #tpu.memory_space<vmem>>, vector<1x32xf32>
    %53 = vector.broadcast %52 : vector<1x32xf32> to vector<16x32xf32>
    %54 = arith.mulf %51, %53 : vector<16x32xf32>
    %c1 = arith.constant 1 : index
    %c0_22 = arith.constant 0 : index
    %55 = vector.load %arg5[%c1, %c0_22] : memref<3x32xf32, #tpu.memory_space<vmem>>, vector<1x32xf32>
    %56 = vector.broadcast %55 : vector<1x32xf32> to vector<16x32xf32>
    %57 = arith.addf %54, %56 : vector<16x32xf32>
    %58 = arith.negf %57 : vector<16x32xf32>
    %59 = math.exp %58 : vector<16x32xf32>
    %cst_23 = arith.constant 1.000000e+00 : f32
    %60 = vector.broadcast %cst_23 : f32 to vector<16x32xf32>
    %61 = arith.addf %60, %59 : vector<16x32xf32>
    %62 = arith.divf %60, %61 : vector<16x32xf32>
    %63 = arith.mulf %57, %62 : vector<16x32xf32>
    %64 = vector.broadcast %9 : vector<16x1xf32> to vector<16x32xf32>
    %65 = arith.mulf %64, %63 : vector<16x32xf32>
    %66 = arith.truncf %65 : vector<16x32xf32> to vector<16x32xbf16>
    %cst_24 = arith.constant dense<0.000000e+00> : vector<16x32xf32>
    %67 = tpu.matmul %0, %66, %cst_24 {dimension_numbers = #tpu.dot_dimension_numbers<[1], [0], [0], [1], [0, 0, 1, 1], [], []>} : vector<16x16xbf16>, vector<16x32xbf16>, vector<16x32xf32> -> vector<16x32xf32>
    %68 = vector.broadcast %11 : vector<16x1xf32> to vector<16x32xf32>
    %69 = arith.mulf %68, %67 : vector<16x32xf32>
    %70 = vector.broadcast %9 : vector<16x1xf32> to vector<16x32xf32>
    %71 = arith.mulf %70, %69 : vector<16x32xf32>
    %72 = arith.truncf %71 : vector<16x32xf32> to vector<16x32xbf16>
    %cst_25 = arith.constant dense<0.000000e+00> : vector<16x32xf32>
    %73 = tpu.matmul %0, %72, %cst_25 {dimension_numbers = #tpu.dot_dimension_numbers<[1], [0], [0], [1], [0, 0, 1, 1], [], []>} : vector<16x16xbf16>, vector<16x32xbf16>, vector<16x32xf32> -> vector<16x32xf32>
    %74 = vector.broadcast %13 : vector<16x1xf32> to vector<16x32xf32>
    %75 = arith.mulf %74, %73 : vector<16x32xf32>
    %76 = arith.subf %75, %63 : vector<16x32xf32>
    %77 = tpu.concatenate %63, %69, %76 in 1 : vector<16x32xf32>, vector<16x32xf32>, vector<16x32xf32> -> vector<16x96xf32>
    %78 = arith.truncf %77 : vector<16x96xf32> to vector<16x96xbf16>
    %c0_26 = arith.constant 0 : index
    %c0_27 = arith.constant 0 : index
    %79 = vector.load %arg3[%c0_26, %c0_27] : memref<96x32xbf16, #tpu.memory_space<vmem>>, vector<96x32xbf16>
    %cst_28 = arith.constant dense<0.000000e+00> : vector<16x32xf32>
    %80 = tpu.matmul %78, %79, %cst_28 {dimension_numbers = #tpu.dot_dimension_numbers<[1], [0], [0], [1], [0, 0, 1, 1], [], []>} : vector<16x96xbf16>, vector<96x32xbf16>, vector<16x32xf32> -> vector<16x32xf32>
    %c2 = arith.constant 2 : index
    %c0_29 = arith.constant 0 : index
    %81 = vector.load %arg5[%c2, %c0_29] : memref<3x32xf32, #tpu.memory_space<vmem>>, vector<1x32xf32>
    %82 = vector.broadcast %81 : vector<1x32xf32> to vector<16x32xf32>
    %83 = arith.addf %80, %82 : vector<16x32xf32>
    %84 = math.tanh %83 : vector<16x32xf32>
    %c0_30 = arith.constant 0 : index
    %c0_31 = arith.constant 0 : index
    %85 = vector.load %arg4[%c0_30, %c0_31] : memref<1x32xbf16, #tpu.memory_space<vmem>>, vector<1x32xbf16>
    %86 = arith.truncf %84 : vector<16x32xf32> to vector<16x32xbf16>
    %cst_32 = arith.constant dense<0.000000e+00> : vector<1x16xf32>
    %87 = tpu.matmul %85, %86, %cst_32 {dimension_numbers = #tpu.dot_dimension_numbers<[1], [1], [0], [0], [0, 0, 1, 0], [], []>} : vector<1x32xbf16>, vector<16x32xbf16>, vector<1x16xf32> -> vector<1x16xf32>
    %cst_33 = arith.constant dense<0.000000e+00> : vector<1xf32>
    %88 = vector.multi_reduction <add>, %87, %cst_33 [1] : vector<1x16xf32> to vector<1xf32>
    %89 = vector.shape_cast %88 : vector<1xf32> to vector<1x1xf32>
    %cst_34 = arith.constant 6.250000e-02 : f32
    %90 = vector.broadcast %cst_34 : f32 to vector<1x1xf32>
    %91 = arith.mulf %89, %90 : vector<1x1xf32>
    %92 = arith.mulf %87, %87 : vector<1x16xf32>
    %cst_35 = arith.constant dense<0.000000e+00> : vector<1xf32>
    %93 = vector.multi_reduction <add>, %92, %cst_35 [1] : vector<1x16xf32> to vector<1xf32>
    %94 = vector.shape_cast %93 : vector<1xf32> to vector<1x1xf32>
    %cst_36 = arith.constant 6.250000e-02 : f32
    %95 = vector.broadcast %cst_36 : f32 to vector<1x1xf32>
    %96 = arith.mulf %94, %95 : vector<1x1xf32>
    %97 = arith.mulf %91, %91 : vector<1x1xf32>
    %98 = arith.subf %96, %97 : vector<1x1xf32>
    %cst_37 = arith.constant 0.000000e+00 : f32
    %99 = vector.broadcast %cst_37 : f32 to vector<1x1xf32>
    %100 = arith.maximumf %98, %99 : vector<1x1xf32>
    %101 = vector.broadcast %91 : vector<1x1xf32> to vector<1x16xf32>
    %102 = arith.subf %87, %101 : vector<1x16xf32>
    %cst_38 = arith.constant 9.99999974E-6 : f32
    %103 = vector.broadcast %cst_38 : f32 to vector<1x1xf32>
    %104 = arith.addf %100, %103 : vector<1x1xf32>
    %105 = math.rsqrt %104 : vector<1x1xf32>
    %106 = vector.broadcast %105 : vector<1x1xf32> to vector<1x16xf32>
    %107 = arith.mulf %102, %106 : vector<1x16xf32>
    %c0_39 = arith.constant 0 : index
    %c0_40 = arith.constant 0 : index
    %108 = vector.load %arg6[%c0_39, %c0_40] : memref<2x16xf32, #tpu.memory_space<vmem>>, vector<1x16xf32>
    %109 = arith.mulf %107, %108 : vector<1x16xf32>
    %c1_41 = arith.constant 1 : index
    %c0_42 = arith.constant 0 : index
    %110 = vector.load %arg6[%c1_41, %c0_42] : memref<2x16xf32, #tpu.memory_space<vmem>>, vector<1x16xf32>
    %111 = arith.addf %109, %110 : vector<1x16xf32>
    %c0_43 = arith.constant 0 : index
    %c0_44 = arith.constant 0 : index
    %112 = vector.load %arg7[%c0_43, %c0_44] : memref<1x16xf32, #tpu.memory_space<vmem>>, vector<1x16xf32>
    tpu.vector_store %arg7[%c0_43, %c0_44], %111 {strides = array<i32>} : memref<1x16xf32, #tpu.memory_space<vmem>>, vector<1x16xf32>,
    return
  }
}

</mosaic_0001>

<llo_original>
// kernel: tpu_custom_call.1
$region0: #{tpu_custom_call.1}
  #allocation0 [shape = 'u32[]', space=smem, size = 0x4, offset = 0x4, fixed_abs, tag = 'smem constant byte address 0x4 - core index']
  #allocation1 [shape = 'u32[144,128]{1,0:T(1,128)}', space=vmem, size = 0x12000, scoped, tag = 'internal scratch']
  %s0 = inlined_call_operand.vmem [shape: f32[16,8], index: 0, kind: input, shape index: {}]
  %s1 = inlined_call_operand.vmem [shape: bf16[16,16], index: 1, kind: input, shape index: {}]
  %s2 = inlined_call_operand.vmem [shape: bf16[24,32], index: 2, kind: input, shape index: {}]
  %s3 = inlined_call_operand.vmem [shape: bf16[96,32], index: 3, kind: input, shape index: {}]
  %s4 = inlined_call_operand.vmem [shape: bf16[1,32], index: 4, kind: input, shape index: {}]
  %s5 = inlined_call_operand.vmem [shape: f32[3,32], index: 5, kind: input, shape index: {}]
  %s6 = inlined_call_operand.vmem [shape: f32[2,16], index: 6, kind: input, shape index: {}]
  %s7 = inlined_call_operand.hbm [shape: f32[1,16], index: 7, kind: output, shape index: {}]
  %s8 = sld [smem:[#allocation0]]
  $region38: #{tpu_custom_call.1} parent=0
    _
  %s10 = ssub.s32 1, %s8
  %s11 = scalar_select 0, %s10, %s8
  $region1: #{tpu_custom_call.1} parent=0
    #allocation2 [shape = 'u8[512]{0}', space=vmem, size = 0x400, scoped, tag = 'output window, operand 0, single buffered']
    #allocation3 [shape = 's32[1]{0}', space=sflag, size = 0x4, scoped, tag = 'scoped memory for tpu_custom_call.1']
    %12 = vsyncpa [#allocation3], 0
    // Predicated region
    $region2: #{tpu_custom_call.1} parent=1 // pred_check
      _
    $region3: #{tpu_custom_call.1} parent=1 // pred_check_branch
      %14 = sbr.rel (0) target = $region5
    $region4: #{tpu_custom_call.1} parent=1 // pred_region
      _
    $region5: #{tpu_custom_call.1} parent=1 // pred_fallthru
      _
    // Predicated region
    $region6: #{tpu_custom_call.1} parent=1 // pred_check
      _
    $region7: #{tpu_custom_call.1} parent=1 // pred_check_branch
      %16 = sbr.rel (0) target = $region9
    $region8: #{tpu_custom_call.1} parent=1 // pred_region
      _
    $region9: #{tpu_custom_call.1} parent=1 // pred_fallthru
      _
    // Predicated region
    $region10: #{tpu_custom_call.1} parent=1 // pred_check
      _
    $region11: #{tpu_custom_call.1} parent=1 // pred_check_branch
      %18 = sbr.rel (0) target = $region13
    $region12: #{tpu_custom_call.1} parent=1 // pred_region
      _
    $region13: #{tpu_custom_call.1} parent=1 // pred_fallthru
      _
    // Predicated region
    $region14: #{tpu_custom_call.1} parent=1 // pred_check
      _
    $region15: #{tpu_custom_call.1} parent=1 // pred_check_branch
      %20 = sbr.rel (0) target = $region17
    $region16: #{tpu_custom_call.1} parent=1 // pred_region
      _
    $region17: #{tpu_custom_call.1} parent=1 // pred_fallthru
      _
    // Predicated region
    $region18: #{tpu_custom_call.1} parent=1 // pred_check
      _
    $region19: #{tpu_custom_call.1} parent=1 // pred_check_branch
      %22 = sbr.rel (0) target = $region21
    $region20: #{tpu_custom_call.1} parent=1 // pred_region
      _
    $region21: #{tpu_custom_call.1} parent=1 // pred_fallthru
      _
    // Predicated region
    $region22: #{tpu_custom_call.1} parent=1 // pred_check
      _
    $region23: #{tpu_custom_call.1} parent=1 // pred_check_branch
      %24 = sbr.rel (0) target = $region25
    $region24: #{tpu_custom_call.1} parent=1 // pred_region
      _
    $region25: #{tpu_custom_call.1} parent=1 // pred_fallthru
      _
    // Predicated region
    $region26: #{tpu_custom_call.1} parent=1 // pred_check
      _
    $region27: #{tpu_custom_call.1} parent=1 // pred_check_branch
      %26 = sbr.rel (0) target = $region29
    $region28: #{tpu_custom_call.1} parent=1 // pred_region
      _
    $region29: #{tpu_custom_call.1} parent=1 // pred_fallthru
      _
    %v29 = vld [vmem:[%s1] sm:$0xf]
    %v30 = vld [vmem:[%s1 + $0x4] sm:$0xf]
    %v33 = vunpack.c.l.b16 %v29
    %v34 = vunpack.c.l.b16 %v30
    %v35 = vpack.c.b16 %v34, %v33
    %vm36 = vcmask 130048
    %v38 = vsel %vm36, %v35, 0
    %40 = vmatprep.subr.bf16.mxu0 0
    %41 = vmatpush1.bf16.msra.mxu0 1065369472
    %42 = vmatprep.subr.bf16.mxu0 0
    %43 = vmatpush1.bf16.msra.mxu0 0
    %44 = vmatprep.subr.bf16.mxu0 0
    %45 = vmatpush1.bf16.msra.mxu0 0
    %46 = vmatprep.subr.bf16.mxu0 0
    %47 = vmatpush1.bf16.msra.mxu0 0
    %48 = vmatprep.subr.bf16.mxu0 0
    %49 = vmatpush1.bf16.msra.mxu0 0
    %50 = vmatprep.subr.bf16.mxu0 0
    %51 = vmatpush1.bf16.msra.mxu0 0
    %52 = vmatprep.subr.bf16.mxu0 0
    %53 = vmatpush1.bf16.msra.mxu0 0
    %54 = vmatprep.subr.bf16.mxu0 0
    %55 = vmatpush1.bf16.msra.mxu0 0
    %56 = vmatprep.subr.bf16.mxu0 0
    %57 = vmatpush1.bf16.msra.mxu0 0
    %58 = vmatprep.subr.bf16.mxu0 0
    %59 = vmatpush1.bf16.msra.mxu0 0
    %60 = vmatprep.subr.bf16.mxu0 0
    %61 = vmatpush1.bf16.msra.mxu0 0
    %62 = vmatprep.subr.bf16.mxu0 0
    %63 = vmatpush1.bf16.msra.mxu0 0
    %64 = vmatprep.subr.bf16.mxu0 0
    %65 = vmatpush1.bf16.msra.mxu0 0
    %66 = vmatprep.subr.bf16.mxu0 0
    %67 = vmatpush1.bf16.msra.mxu0 0
    %68 = vmatprep.subr.bf16.mxu0 0
    %69 = vmatpush1.bf16.msra.mxu0 0
    %70 = vmatprep.subr.bf16.mxu0 0
    %71 = vmatpush1.bf16.msra.mxu0 0
    %72 = vmatprep.mubr.bf16.mxu0 0
    %73 = vmatmul.mubr.bf16.gmra.mrb[0].mxu0 %v38
    %v74 = vpop.f32.mrb[0].mxu0
    %v75 = vadd.f32 0.0, %v74
    %v76 = vpop.f32.mrb[0].mxu0
    %v77 = vpop.f32.mrb[0].mxu0
    %v78 = vadd.f32 0.0, %v77
    %v79 = vpop.f32.mrb[0].mxu0
    %80 = vdwg.mxu0
    %vm81 = vcmp.gt.f32.partialorder %v75, 0.0
    %vm82 = vcmp.gt.f32.partialorder %v78, 0.0
    %v83 = vmax.f32 %v75, 1e-12
    %v84 = vmax.f32 %v78, 1e-12
    %v85 = vrsqrt.pop %v83
    %v86 = vrsqrt.pop %v84
    %v87 = vsel %vm81, %v85, 0.0
    %v88 = vsel %vm82, %v86, 0.0
    %v89 = vsub.f32 0.0, %v87
    %v90 = vsub.f32 0.0, %v88
    %v91 = vmul.f32 %v87, -2.0
    %v92 = vmul.f32 %v88, -2.0
    %v93 = vld [vmem:[%s0] sm:$0xff]
    %v94 = vld [vmem:[%s0 + $0x8] sm:$0xff]
    %96 = vset.pattern.permute.xlu0 0
    %97 = vperm.xlu0 %96, %v87
    %v98 = vpop.permute.xlu0 %97
    %101 = vset.pattern.permute.xlu0 0
    %102 = vperm.xlu0 %101, %v88
    %v103 = vpop.permute.xlu0 %102
    %v105 = vmul.f32 %v98, %v93
    %v106 = vmul.f32 %v103, %v94
    %v107 = vpack.c.bf16 %v106, %v105
    %108 = vmatprep.subr.bf16.mxu0 0
    %109 = vmatpush1.bf16.msra.mxu0 %v107
    %110 = vmatprep.subr.bf16.mxu0 0
    %111 = vmatpush1.bf16.msra.mxu0 0
    %112 = vmatprep.subr.bf16.mxu0 0
    %113 = vmatpush1.bf16.msra.mxu0 0
    %114 = vmatprep.subr.bf16.mxu0 0
    %115 = vmatpush1.bf16.msra.mxu0 0
    %116 = vmatprep.subr.bf16.mxu0 0
    %117 = vmatpush1.bf16.msra.mxu0 0
    %118 = vmatprep.subr.bf16.mxu0 0
    %119 = vmatpush1.bf16.msra.mxu0 0
    %120 = vmatprep.subr.bf16.mxu0 0
    %121 = vmatpush1.bf16.msra.mxu0 0
    %122 = vmatprep.subr.bf16.mxu0 0
    %123 = vmatpush1.bf16.msra.mxu0 0
    %124 = vmatprep.subr.bf16.mxu0 0
    %125 = vmatpush1.bf16.msra.mxu0 0
    %126 = vmatprep.subr.bf16.mxu0 0
    %127 = vmatpush1.bf16.msra.mxu0 0
    %128 = vmatprep.subr.bf16.mxu0 0
    %129 = vmatpush1.bf16.msra.mxu0 0
    %130 = vmatprep.subr.bf16.mxu0 0
    %131 = vmatpush1.bf16.msra.mxu0 0
    %132 = vmatprep.subr.bf16.mxu0 0
    %133 = vmatpush1.bf16.msra.mxu0 0
    %134 = vmatprep.subr.bf16.mxu0 0
    %135 = vmatpush1.bf16.msra.mxu0 0
    %136 = vmatprep.subr.bf16.mxu0 0
    %137 = vmatpush1.bf16.msra.mxu0 0
    %138 = vmatprep.subr.bf16.mxu0 0
    %139 = vmatpush1.bf16.msra.mxu0 0
    %140 = vmatprep.mubr.bf16.mxu0 0
    %141 = vmatmul.mubr.bf16.gmra.mrb[0].mxu0 %v38
    %v142 = vpop.f32.mrb[0].mxu0
    %v143 = vadd.f32 0.0, %v142
    %v144 = vpop.f32.mrb[0].mxu0
    %v145 = vpop.f32.mrb[0].mxu0
    %v146 = vadd.f32 0.0, %v145
    %v147 = vpop.f32.mrb[0].mxu0
    %148 = vdwg.mxu0
    %150 = vset.pattern.permute.xlu0 0
    %151 = vperm.xlu0 %150, %v89
    %v152 = vpop.permute.xlu0 %151
    %155 = vset.pattern.permute.xlu0 0
    %156 = vperm.xlu0 %155, %v90
    %v157 = vpop.permute.xlu0 %156
    %v159 = vmul.f32 %v152, %v143
    %v160 = vmul.f32 %v157, %v146
    %v161 = vmul.f32 %v98, %v159
    %v162 = vmul.f32 %v103, %v160
    %v163 = vpack.c.bf16 %v162, %v161
    %164 = vmatprep.subr.bf16.mxu0 0
    %165 = vmatpush1.bf16.msra.mxu0 %v163
    %166 = vmatprep.subr.bf16.mxu0 0
    %167 = vmatpush1.bf16.msra.mxu0 0
    %168 = vmatprep.subr.bf16.mxu0 0
    %169 = vmatpush1.bf16.msra.mxu0 0
    %170 = vmatprep.subr.bf16.mxu0 0
    %171 = vmatpush1.bf16.msra.mxu0 0
    %172 = vmatprep.subr.bf16.mxu0 0
    %173 = vmatpush1.bf16.msra.mxu0 0
    %174 = vmatprep.subr.bf16.mxu0 0
    %175 = vmatpush1.bf16.msra.mxu0 0
    %176 = vmatprep.subr.bf16.mxu0 0
    %177 = vmatpush1.bf16.msra.mxu0 0
    %178 = vmatprep.subr.bf16.mxu0 0
    %179 = vmatpush1.bf16.msra.mxu0 0
    %180 = vmatprep.subr.bf16.mxu0 0
    %181 = vmatpush1.bf16.msra.mxu0 0
    %182 = vmatprep.subr.bf16.mxu0 0
    %183 = vmatpush1.bf16.msra.mxu0 0
    %184 = vmatprep.subr.bf16.mxu0 0
    %185 = vmatpush1.bf16.msra.mxu0 0
    %186 = vmatprep.subr.bf16.mxu0 0
    %187 = vmatpush1.bf16.msra.mxu0 0
    %188 = vmatprep.subr.bf16.mxu0 0
    %189 = vmatpush1.bf16.msra.mxu0 0
    %190 = vmatprep.subr.bf16.mxu0 0
    %191 = vmatpush1.bf16.msra.mxu0 0
    %192 = vmatprep.subr.bf16.mxu0 0
    %193 = vmatpush1.bf16.msra.mxu0 0
    %194 = vmatprep.subr.bf16.mxu0 0
    %195 = vmatpush1.bf16.msra.mxu0 0
    %196 = vmatprep.mubr.bf16.mxu0 0
    %197 = vmatmul.mubr.bf16.gmra.mrb[0].mxu0 %v38
    %v198 = vpop.f32.mrb[0].mxu0
    %v199 = vadd.f32 0.0, %v198
    %v200 = vpop.f32.mrb[0].mxu0
    %v201 = vpop.f32.mrb[0].mxu0
    %v202 = vadd.f32 0.0, %v201
    %v203 = vpop.f32.mrb[0].mxu0
    %204 = vdwg.mxu0
    %206 = vset.pattern.permute.xlu0 0
    %207 = vperm.xlu0 %206, %v91
    %v208 = vpop.permute.xlu0 %207
    %211 = vset.pattern.permute.xlu0 0
    %212 = vperm.xlu0 %211, %v92
    %v213 = vpop.permute.xlu0 %212
    %v215 = vmul.f32 %v208, %v199
    %v216 = vmul.f32 %v213, %v202
    %v217 = vsub.f32 %v215, %v93
    %v218 = vsub.f32 %v216, %v94
    %221 = vrot.lane.b32.xlu0 %v159, 8
    %v222 = vpop.permute.xlu0 %221
    %223 = vrot.lane.b32.xlu0 %v160, 8
    %v224 = vpop.permute.xlu0 %223
    %229 = vrot.lane.b32.xlu0 %v217, 16
    %v230 = vpop.permute.xlu0 %229
    %231 = vrot.lane.b32.xlu0 %v218, 16
    %v232 = vpop.permute.xlu0 %231
    %vm235 = vcmask 64512
    %v236 = vsel %vm235, %v93, %v222
    %v237 = vsel %vm235, %v94, %v224
    %v238 = vsel %vm36, %v236, %v230
    %v239 = vsel %vm36, %v237, %v232
    %v240 = vpack.c.bf16 %v239, %v238
    %v241 = vld [vmem:[%s2] sm:$0xf]
    %v242 = vld [vmem:[%s2 + $0x4] sm:$0xf]
    %v243 = vld [vmem:[%s2 + $0x8] sm:$0xf]
    %v247 = vunpack.c.l.b16 %v241
    %v248 = vunpack.c.l.b16 %v242
    %v249 = vunpack.c.l.b16 %v243
    %v250 = vpack.c.b16 %v248, %v247
    %v251 = vpack.c.b16 %v249, %v249
    %vm253 = vcmask 195584
    %v255 = vsel %vm253, %v240, 0
    %vm257 = vcmask 1043456
    %v259 = vsel %vm257, %v251, 0
    %261 = vmatprep.subr.bf16.mxu0 0
    %262 = vmatpush1.bf16.msra.mxu0 %v250
    %263 = vmatprep.subr.bf16.mxu0 0
    %264 = vmatpush1.bf16.msra.mxu0 %v259
    %265 = vmatprep.subr.bf16.mxu0 0
    %266 = vmatpush1.bf16.msra.mxu0 0
    %267 = vmatprep.subr.bf16.mxu0 0
    %268 = vmatpush1.bf16.msra.mxu0 0
    %269 = vmatprep.subr.bf16.mxu0 0
    %270 = vmatpush1.bf16.msra.mxu0 0
    %271 = vmatprep.subr.bf16.mxu0 0
    %272 = vmatpush1.bf16.msra.mxu0 0
    %273 = vmatprep.subr.bf16.mxu0 0
    %274 = vmatpush1.bf16.msra.mxu0 0
    %275 = vmatprep.subr.bf16.mxu0 0
    %276 = vmatpush1.bf16.msra.mxu0 0
    %277 = vmatprep.subr.bf16.mxu0 0
    %278 = vmatpush1.bf16.msra.mxu0 0
    %279 = vmatprep.subr.bf16.mxu0 0
    %280 = vmatpush1.bf16.msra.mxu0 0
    %281 = vmatprep.subr.bf16.mxu0 0
    %282 = vmatpush1.bf16.msra.mxu0 0
    %283 = vmatprep.subr.bf16.mxu0 0
    %284 = vmatpush1.bf16.msra.mxu0 0
    %285 = vmatprep.subr.bf16.mxu0 0
    %286 = vmatpush1.bf16.msra.mxu0 0
    %287 = vmatprep.subr.bf16.mxu0 0
    %288 = vmatpush1.bf16.msra.mxu0 0
    %289 = vmatprep.subr.bf16.mxu0 0
    %290 = vmatpush1.bf16.msra.mxu0 0
    %291 = vmatprep.subr.bf16.mxu0 0
    %292 = vmatpush1.bf16.msra.mxu0 0
    %293 = vmatprep.mubr.bf16.mxu0 0
    %294 = vmatmul.mubr.bf16.gmra.mrb[0].mxu0 %v255
    %v295 = vpop.f32.mrb[0].mxu0
    %v296 = vadd.f32 0.0, %v295
    %v297 = vpop.f32.mrb[0].mxu0
    %v298 = vpop.f32.mrb[0].mxu0
    %v299 = vadd.f32 0.0, %v298
    %v300 = vpop.f32.mrb[0].mxu0
    %301 = vdwg.mxu0
    %vm302 = vcmask 261120
    %v303 = vsel %vm302, %v296, 0.0
    %v304 = vsel %vm302, %v299, 0.0
    %v305 = vadd.f32 %v303, %v304
    %v306 = vrot.slane %v305, 4
    %v307 = vadd.f32 %v305, %v306
    %v308 = vrot.slane %v307, 2
    %v309 = vadd.f32 %v307, %v308
    %v310 = vrot.slane %v309, 1
    %v311 = vadd.f32 %v309, %v310
    %v312 = vmul.f32 %v296, %v296
    %v313 = vmul.f32 %v299, %v299
    %v314 = vsel %vm302, %v312, 0.0
    %v315 = vsel %vm302, %v313, 0.0
    %v316 = vadd.f32 %v314, %v315
    %v317 = vrot.slane %v316, 4
    %v318 = vadd.f32 %v316, %v317
    %v319 = vrot.slane %v318, 2
    %v320 = vadd.f32 %v318, %v319
    %v321 = vrot.slane %v320, 1
    %v322 = vadd.f32 %v320, %v321
    %v323 = vmul.f32 %v311, 0.0625
    %v324 = vmul.f32 %v322, 0.0625
    %v325 = vmul.f32 %v323, %v323
    %v326 = vsub.f32 %v324, %v325
    %v327 = vmax.f32 %v326, 0.0
    %v328 = vsub.f32 %v296, %v323
    %v329 = vsub.f32 %v299, %v323
    %v330 = vadd.f32 %v327, 1e-05
    %v331 = vrsqrt.pop %v330
    %v332 = vmul.f32 %v328, %v331
    %v333 = vmul.f32 %v329, %v331
    %v334 = vld [vmem:[%s5] sm:$0x1]
    %v335 = vlaneseq
    %v336 = vshrl.u32 %v335, 7
    %v337 = vsub.s32 0, %v336
    %v338 = vrot.slane %v334, %v337
    %v339 = vmul.f32 %v332, %v338
    %v340 = vmul.f32 %v333, %v338
    %v341 = vld [vmem:[%s5 + $0x1] sm:$0x1]
    %v342 = vlaneseq
    %v343 = vshrl.u32 %v342, 7
    %v344 = vsub.s32 0, %v343
    %v345 = vrot.slane %v341, %v344
    %v346 = vadd.f32 %v339, %v345
    %v347 = vadd.f32 %v340, %v345
    %v348 = vxor.u32 %v346, 2147483648
    %v349 = vxor.u32 %v347, 2147483648
    %v350 = vmul.f32 %v348, 1.442695
    %v351 = vpow.pop %v350
    %v352 = vmul.f32 %v349, 1.442695
    %v353 = vpow.pop %v352
    %v354 = vadd.f32 %v351, 1.0
    %v355 = vadd.f32 %v353, 1.0
    %v356 = vrcp.pop %v354
    %v357 = vmul.f32 1.0, %v356
    %v358 = vrcp.pop %v355
    %v359 = vmul.f32 1.0, %v358
    %v360 = vmul.f32 %v346, %v357
    %v361 = vmul.f32 %v347, %v359
    %v362 = vmul.f32 %v98, %v360
    %v363 = vmul.f32 %v103, %v361
    %v364 = vpack.c.bf16 %v363, %v362
    %365 = vmatprep.subr.bf16.mxu0 0
    %366 = vmatpush1.bf16.msra.mxu0 %v364
    %367 = vmatprep.subr.bf16.mxu0 0
    %368 = vmatpush1.bf16.msra.mxu0 0
    %369 = vmatprep.subr.bf16.mxu0 0
    %370 = vmatpush1.bf16.msra.mxu0 0
    %371 = vmatprep.subr.bf16.mxu0 0
    %372 = vmatpush1.bf16.msra.mxu0 0
    %373 = vmatprep.subr.bf16.mxu0 0
    %374 = vmatpush1.bf16.msra.mxu0 0
    %375 = vmatprep.subr.bf16.mxu0 0
    %376 = vmatpush1.bf16.msra.mxu0 0
    %377 = vmatprep.subr.bf16.mxu0 0
    %378 = vmatpush1.bf16.msra.mxu0 0
    %379 = vmatprep.subr.bf16.mxu0 0
    %380 = vmatpush1.bf16.msra.mxu0 0
    %381 = vmatprep.subr.bf16.mxu0 0
    %382 = vmatpush1.bf16.msra.mxu0 0
    %383 = vmatprep.subr.bf16.mxu0 0
    %384 = vmatpush1.bf16.msra.mxu0 0
    %385 = vmatprep.subr.bf16.mxu0 0
    %386 = vmatpush1.bf16.msra.mxu0 0
    %387 = vmatprep.subr.bf16.mxu0 0
    %388 = vmatpush1.bf16.msra.mxu0 0
    %389 = vmatprep.subr.bf16.mxu0 0
    %390 = vmatpush1.bf16.msra.mxu0 0
    %391 = vmatprep.subr.bf16.mxu0 0
    %392 = vmatpush1.bf16.msra.mxu0 0
    %393 = vmatprep.subr.bf16.mxu0 0
    %394 = vmatpush1.bf16.msra.mxu0 0
    %395 = vmatprep.subr.bf16.mxu0 0
    %396 = vmatpush1.bf16.msra.mxu0 0
    %397 = vmatprep.mubr.bf16.mxu0 0
    %398 = vmatmul.mubr.bf16.gmra.mrb[0].mxu0 %v38
    %v399 = vpop.f32.mrb[0].mxu0
    %v400 = vadd.f32 0.0, %v399
    %v401 = vpop.f32.mrb[0].mxu0
    %v402 = vpop.f32.mrb[0].mxu0
    %v403 = vadd.f32 0.0, %v402
    %v404 = vpop.f32.mrb[0].mxu0
    %405 = vdwg.mxu0
    %v406 = vmul.f32 %v152, %v400
    %v407 = vmul.f32 %v157, %v403
    %v408 = vmul.f32 %v98, %v406
    %v409 = vmul.f32 %v103, %v407
    %v410 = vpack.c.bf16 %v409, %v408
    %411 = vmatprep.subr.bf16.mxu0 0
    %412 = vmatpush1.bf16.msra.mxu0 %v410
    %413 = vmatprep.subr.bf16.mxu0 0
    %414 = vmatpush1.bf16.msra.mxu0 0
    %415 = vmatprep.subr.bf16.mxu0 0
    %416 = vmatpush1.bf16.msra.mxu0 0
    %417 = vmatprep.subr.bf16.mxu0 0
    %418 = vmatpush1.bf16.msra.mxu0 0
    %419 = vmatprep.subr.bf16.mxu0 0
    %420 = vmatpush1.bf16.msra.mxu0 0
    %421 = vmatprep.subr.bf16.mxu0 0
    %422 = vmatpush1.bf16.msra.mxu0 0
    %423 = vmatprep.subr.bf16.mxu0 0
    %424 = vmatpush1.bf16.msra.mxu0 0
    %425 = vmatprep.subr.bf16.mxu0 0
    %426 = vmatpush1.bf16.msra.mxu0 0
    %427 = vmatprep.subr.bf16.mxu0 0
    %428 = vmatpush1.bf16.msra.mxu0 0
    %429 = vmatprep.subr.bf16.mxu0 0
    %430 = vmatpush1.bf16.msra.mxu0 0
    %431 = vmatprep.subr.bf16.mxu0 0
    %432 = vmatpush1.bf16.msra.mxu0 0
    %433 = vmatprep.subr.bf16.mxu0 0
    %434 = vmatpush1.bf16.msra.mxu0 0
    %435 = vmatprep.subr.bf16.mxu0 0
    %436 = vmatpush1.bf16.msra.mxu0 0
    %437 = vmatprep.subr.bf16.mxu0 0
    %438 = vmatpush1.bf16.msra.mxu0 0
    %439 = vmatprep.subr.bf16.mxu0 0
    %440 = vmatpush1.bf16.msra.mxu0 0
    %441 = vmatprep.subr.bf16.mxu0 0
    %442 = vmatpush1.bf16.msra.mxu0 0
    %443 = vmatprep.mubr.bf16.mxu0 0
    %444 = vmatmul.mubr.bf16.gmra.mrb[0].mxu0 %v38
    %v445 = vpop.f32.mrb[0].mxu0
    %v446 = vadd.f32 0.0, %v445
    %v447 = vpop.f32.mrb[0].mxu0
    %v448 = vpop.f32.mrb[0].mxu0
    %v449 = vadd.f32 0.0, %v448
    %v450 = vpop.f32.mrb[0].mxu0
    %451 = vdwg.mxu0
    %v452 = vmul.f32 %v208, %v446
    %v453 = vmul.f32 %v213, %v449
    %v454 = vsub.f32 %v452, %v360
    %v455 = vsub.f32 %v453, %v361
    %458 = vrot.lane.b32.xlu0 %v406, 32
    %v459 = vpop.permute.xlu0 %458
    %460 = vrot.lane.b32.xlu0 %v407, 32
    %v461 = vpop.permute.xlu0 %460
    %466 = vrot.lane.b32.xlu0 %v454, 64
    %v467 = vpop.permute.xlu0 %466
    %468 = vrot.lane.b32.xlu0 %v455, 64
    %v469 = vpop.permute.xlu0 %468
    %v472 = vsel %vm302, %v360, %v459
    %v473 = vsel %vm302, %v361, %v461
    %vm474 = vcmask 523264
    %v475 = vsel %vm474, %v472, %v467
    %v476 = vsel %vm474, %v473, %v469
    %v477 = vpack.c.bf16 %v476, %v475
    %v478 = vld [vmem:[%s3] sm:$0xf]
    %v479 = vld [vmem:[%s3 + $0x4] sm:$0xf]
    %v480 = vld [vmem:[%s3 + $0x8] sm:$0xf]
    %v481 = vld [vmem:[%s3 + $0xc] sm:$0xf]
    %v482 = vld [vmem:[%s3 + $0x10] sm:$0xf]
    %v483 = vld [vmem:[%s3 + $0x14] sm:$0xf]
    %v484 = vld [vmem:[%s3 + $0x18] sm:$0xf]
    %v485 = vld [vmem:[%s3 + $0x1c] sm:$0xf]
    %v486 = vld [vmem:[%s3 + $0x20] sm:$0xf]
    %v487 = vld [vmem:[%s3 + $0x24] sm:$0xf]
    %v488 = vld [vmem:[%s3 + $0x28] sm:$0xf]
    %v489 = vld [vmem:[%s3 + $0x2c] sm:$0xf]
    %v490 = vld [vmem:[%s5 + $0x2] sm:$0x1]
    %v491 = vlaneseq
    %v492 = vshrl.u32 %v491, 7
    %v493 = vsub.s32 0, %v492
    %v494 = vrot.slane %v490, %v493
    %v507 = vunpack.c.l.b16 %v478
    %v508 = vunpack.c.l.b16 %v479
    %v509 = vunpack.c.l.b16 %v480
    %v510 = vunpack.c.l.b16 %v481
    %v511 = vunpack.c.l.b16 %v482
    %v512 = vunpack.c.l.b16 %v483
    %v513 = vunpack.c.l.b16 %v484
    %v514 = vunpack.c.l.b16 %v485
    %v515 = vunpack.c.l.b16 %v486
    %v516 = vunpack.c.l.b16 %v487
    %v517 = vunpack.c.l.b16 %v488
    %v518 = vunpack.c.l.b16 %v489
    %v519 = vpack.c.b16 %v508, %v507
    %v520 = vpack.c.b16 %v510, %v509
    %v521 = vpack.c.b16 %v512, %v511
    %v522 = vpack.c.b16 %v514, %v513
    %v523 = vpack.c.b16 %v516, %v515
    %v524 = vpack.c.b16 %v518, %v517
    %vm531 = vcmask 785408
    %v533 = vsel %vm531, %v477, 0
    %535 = vmatprep.subr.bf16.mxu0 0
    %536 = vmatpush1.bf16.msra.mxu0 %v519
    %537 = vmatprep.subr.bf16.mxu0 0
    %538 = vmatpush1.bf16.msra.mxu0 %v520
    %539 = vmatprep.subr.bf16.mxu0 0
    %540 = vmatpush1.bf16.msra.mxu0 %v521
    %541 = vmatprep.subr.bf16.mxu0 0
    %542 = vmatpush1.bf16.msra.mxu0 %v522
    %543 = vmatprep.subr.bf16.mxu0 0
    %544 = vmatpush1.bf16.msra.mxu0 %v523
    %545 = vmatprep.subr.bf16.mxu0 0
    %546 = vmatpush1.bf16.msra.mxu0 %v524
    %547 = vmatprep.subr.bf16.mxu0 0
    %548 = vmatpush1.bf16.msra.mxu0 0
    %549 = vmatprep.subr.bf16.mxu0 0
    %550 = vmatpush1.bf16.msra.mxu0 0
    %551 = vmatprep.subr.bf16.mxu0 0
    %552 = vmatpush1.bf16.msra.mxu0 0
    %553 = vmatprep.subr.bf16.mxu0 0
    %554 = vmatpush1.bf16.msra.mxu0 0
    %555 = vmatprep.subr.bf16.mxu0 0
    %556 = vmatpush1.bf16.msra.mxu0 0
    %557 = vmatprep.subr.bf16.mxu0 0
    %558 = vmatpush1.bf16.msra.mxu0 0
    %559 = vmatprep.subr.bf16.mxu0 0
    %560 = vmatpush1.bf16.msra.mxu0 0
    %561 = vmatprep.subr.bf16.mxu0 0
    %562 = vmatpush1.bf16.msra.mxu0 0
    %563 = vmatprep.subr.bf16.mxu0 0
    %564 = vmatpush1.bf16.msra.mxu0 0
    %565 = vmatprep.subr.bf16.mxu0 0
    %566 = vmatpush1.bf16.msra.mxu0 0
    %567 = vmatprep.mubr.bf16.mxu0 0
    %568 = vmatmul.mubr.bf16.gmra.mrb[0].mxu0 %v533
    %v569 = vpop.f32.mrb[0].mxu0
    %v570 = vadd.f32 %v494, %v569
    %v571 = vpop.f32.mrb[0].mxu0
    %v572 = vpop.f32.mrb[0].mxu0
    %v573 = vadd.f32 %v494, %v572
    %v574 = vpop.f32.mrb[0].mxu0
    %575 = vdwg.mxu0
    %v576 = vtanh.pop %v570
    %v577 = vtanh.pop %v573
    %v578 = vld [vmem:[%s4] sm:$0x1]
    %v579 = vpack.c.bf16 %v577, %v576
    %v581 = vsel %vm302, %v578, 0
    %v584 = vsel %vm302, %v579, 0
    %586 = vmatprep.subr.bf16.mxu0 0
    %587 = vmatpush1.bf16.xpose.msra.mxu0 %v584
    %588 = vmatprep.subr.bf16.mxu0 0
    %589 = vmatpush1.bf16.xpose.msra.mxu0 0
    %590 = vmatprep.subr.bf16.mxu0 0
    %591 = vmatpush1.bf16.xpose.msra.mxu0 0
    %592 = vmatprep.subr.bf16.mxu0 0
    %593 = vmatpush1.bf16.xpose.msra.mxu0 0
    %594 = vmatprep.subr.bf16.mxu0 0
    %595 = vmatpush1.bf16.xpose.msra.mxu0 0
    %596 = vmatprep.subr.bf16.mxu0 0
    %597 = vmatpush1.bf16.xpose.msra.mxu0 0
    %598 = vmatprep.subr.bf16.mxu0 0
    %599 = vmatpush1.bf16.xpose.msra.mxu0 0
    %600 = vmatprep.subr.bf16.mxu0 0
    %601 = vmatpush1.bf16.xpose.msra.mxu0 0
    %602 = vmatprep.subr.bf16.mxu0 0
    %603 = vmatpush1.bf16.xpose.msra.mxu0 0
    %604 = vmatprep.subr.bf16.mxu0 0
    %605 = vmatpush1.bf16.xpose.msra.mxu0 0
    %606 = vmatprep.subr.bf16.mxu0 0
    %607 = vmatpush1.bf16.xpose.msra.mxu0 0
    %608 = vmatprep.subr.bf16.mxu0 0
    %609 = vmatpush1.bf16.xpose.msra.mxu0 0
    %610 = vmatprep.subr.bf16.mxu0 0
    %611 = vmatpush1.bf16.xpose.msra.mxu0 0
    %612 = vmatprep.subr.bf16.mxu0 0
    %613 = vmatpush1.bf16.xpose.msra.mxu0 0
    %614 = vmatprep.subr.bf16.mxu0 0
    %615 = vmatpush1.bf16.xpose.msra.mxu0 0
    %616 = vmatprep.subr.bf16.mxu0 0
    %617 = vmatpush1.bf16.xpose.msra.mxu0 0
    %618 = vmatprep.mubr.bf16.mxu0 0
    %619 = vmatmul.mubr.bf16.gmra.mrb[0].mxu0 %v581
    %v620 = vpop.f32.mrb[0].mxu0
    %v621 = vadd.f32 0.0, %v620
    %v622 = vpop.f32.mrb[0].mxu0
    %v623 = vpop.f32.mrb[0].mxu0
    %v624 = vpop.f32.mrb[0].mxu0
    %625 = vdwg.mxu0
    %vm626 = vcmask 122880
    %v627 = vsel %vm626, %v621, 0.0
    %628 = vadd.xlane.f32.xlu0 %v627
    %v629 = vpop.xlane.xlu0 %628
    %v630 = vmul.f32 %v629, 0.0625
    %v631 = vmul.f32 %v621, %v621
    %v632 = vsel %vm626, %v631, 0.0
    %633 = vadd.xlane.f32.xlu0 %v632
    %v634 = vpop.xlane.xlu0 %633
    %v635 = vmul.f32 %v634, 0.0625
    %v636 = vmul.f32 %v630, %v630
    %v637 = vsub.f32 %v635, %v636
    %v638 = vmax.f32 %v637, 0.0
    %v639 = vsub.f32 %v621, %v630
    %v640 = vadd.f32 %v638, 1e-05
    %v641 = vrsqrt.pop %v640
    %v642 = vmul.f32 %v639, %v641
    %v643 = vld [vmem:[%s6] sm:$0x1]
    %v644 = vmul.f32 %v642, %v643
    %v645 = vld [vmem:[%s6 + $0x1] sm:$0x1]
    %v646 = vadd.f32 %v644, %v645
    %647 = vst.msk [vmem:[#allocation2] sm:$0x1] %vm626, %v646
    // Predicated region
    $region30: #{tpu_custom_call.1} parent=1 // pred_check
      _
    $region31: #{tpu_custom_call.1} parent=1 // pred_check_branch
      %649 = sbr.rel (0) target = $region33
    $region32: #{tpu_custom_call.1} parent=1 // pred_region
      %s651 = ssub.s32 16, 16
      %652 = vsyncadd [#allocation3], %s651
      %s654 = sshll.u32 [#allocation2], 4
      %s655 = int_to_ptr.vmem [resolvable:$true] %s654
      %657 = dma.vmem_to_hbm [thread:$0]  %s655, 16, %s7, [#allocation3]
    $region33: #{tpu_custom_call.1} parent=1 // pred_fallthru
      _
    // Predicated region
    $region34: #{tpu_custom_call.1} parent=1 // pred_check
      _
    $region35: #{tpu_custom_call.1} parent=1 // pred_check_branch
      %659 = sbr.rel (0) target = $region37
    $region36: #{tpu_custom_call.1} parent=1 // pred_region
      %660 = dma.done [#allocation3], 16
    $region37: #{tpu_custom_call.1} parent=1 // pred_fallthru
      _
    %661 = vsyncpa [#allocation3], 1

</llo_original>
